<compile_context>
chip_gen: v6e
topology: v6e:2x2x1
jax: 0.10.0
libtpu: 0.0.40
codegen_flags: <defaults>
</compile_context>

<pallas_src>
import functools

import jax
import jax.numpy as jnp
from jax.experimental import pallas as pl
from jax.experimental.pallas import tpu as pltpu


# ---------------------------------------------------------------------------
# Kernels
# ---------------------------------------------------------------------------

def _attn_pool_single_kernel(x_ref, w_ref, b_ref, o_ref):
    """Whole sequence in one tile: plain softmax, no scratch, no online rescale."""
    x = x_ref[...]                                   # (BB, S, E) native dtype
    w = w_ref[...]                                   # (BB, 1, E) x dtype (resident)
    bias = b_ref[0]                                  # SMEM scalar

    # Scores on the MXU (batched (1,E)x(E,S) contraction); sequence lands on the lane axis.
    s = jnp.einsum('bqe,bse->bqs', w, x,
                   preferred_element_type=jnp.float32) + bias      # (BB, 1, S) f32

    m = jnp.max(s, axis=-1, keepdims=True)                         # (BB, 1, 1)
    p = jnp.exp(s - m)                                             # (BB, 1, S)
    l = jnp.sum(p, axis=-1, keepdims=True)                         # (BB, 1, 1)

    # Keep the big matmul in x's native dtype (MXU accumulates in f32 anyway).
    p_mm = p if x.dtype == jnp.float32 else p.astype(x.dtype)
    acc = jnp.einsum('bqs,bse->bqe', p_mm, x,
                     preferred_element_type=jnp.float32)           # (BB, 1, E)

    inv_l = pl.reciprocal(l, approx=False)   # exact (1e-5 tol); approx=True = free EUP vrcp
    o_ref[...] = (acc * inv_l).astype(o_ref.dtype)


def _attn_pool_tiled_kernel(x_ref, w_ref, b_ref, o_ref, m_sc, l_sc, acc_sc,
                            *, seq_len, seq_tile, needs_mask):
    """Sequence tiled along grid axis 1: online softmax with resident f32 accumulator."""
    s_idx = pl.program_id(1)

    @pl.when(s_idx == 0)
    def _():
        m_sc[...] = jnp.full_like(m_sc, -jnp.inf)
        l_sc[...] = jnp.zeros_like(l_sc)
        acc_sc[...] = jnp.zeros_like(acc_sc)

    x = x_ref[...]                                   # (BB, TS, E) native dtype (no f32 upcast)
    w = w_ref[...]                                   # (BB, 1, E)  x dtype (resident)
    bias = b_ref[0]                                  # SMEM scalar

    # Scores on the MXU; (BB, 1, TS) keeps the sequence lane-dense for the softmax stats.
    s = jnp.einsum('bqe,bse->bqs', w, x,
                   preferred_element_type=jnp.float32) + bias

    if needs_mask:  # static: sequence was zero-padded up to a multiple of seq_tile
        pos = jax.lax.broadcasted_iota(jnp.int32, s.shape, 2) + s_idx * seq_tile
        s = jnp.where(pos < seq_len, s, -jnp.inf)    # padded positions: weight exactly 0

    # Online-softmax update across sequence tiles.
    m_new = jnp.maximum(m_sc[...], jnp.max(s, axis=-1, keepdims=True))   # (BB, 1, 1)
    alpha = jnp.exp(m_sc[...] - m_new)                                   # (BB, 1, 1)
    p = jnp.exp(s - m_new)                                               # (BB, 1, TS)

    l_sc[...] = alpha * l_sc[...] + jnp.sum(p, axis=-1, keepdims=True)

    p_mm = p if x.dtype == jnp.float32 else p.astype(x.dtype)
    acc_sc[...] = alpha * acc_sc[...] + jnp.einsum('bqs,bse->bqe', p_mm, x,
                                                   preferred_element_type=jnp.float32)
    m_sc[...] = m_new

    @pl.when(s_idx == pl.num_programs(1) - 1)
    def _():
        inv_l = pl.reciprocal(l_sc[...], approx=False)
        o_ref[...] = (acc_sc[...] * inv_l).astype(o_ref.dtype)


# ---------------------------------------------------------------------------
# Tiling / budget selection
# ---------------------------------------------------------------------------

def _ceil_div(a, b):
    return -(-a // b)


def _ceil_to(a, m):
    return _ceil_div(a, m) * m


def _vmem_budgets():
    """(x-block byte budget, vmem_limit clamp). Only raise budgets when the device is
    positively identified as a 128-MiB-VMEM generation; unknown/v7x stays conservative."""
    kind = ""
    try:
        kind = jax.devices()[0].device_kind.lower()
    except Exception:
        pass
    if any(tag in kind for tag in ("v4", "v5", "v6")):      # 128 MiB VMEM parts
        return 24 * 1024 * 1024, 96 * 1024 * 1024
    return 12 * 1024 * 1024, 48 * 1024 * 1024                # v7x (64 MiB/TC) or unknown


def _choose_blocks(B, S, E, elem, budget):
    """Pick (BB, padded_B, TS, padded_S) so one (BB, TS, E) x block ~ fills `budget`."""
    sub = max(8, 32 // elem)            # sublane pack: 8 f32, 16 bf16, 32 int8/fp8
    row = E * elem                      # bytes of one (1, 1, E) slab

    if sub * S * row <= budget:
        TS, Sp = S, S                   # whole sequence in one tile -> no online softmax
    else:
        ts_max = max(sub, (budget // (sub * row)) // sub * sub)
        n_seq = _ceil_div(S, ts_max)
        TS = _ceil_to(_ceil_div(S, n_seq), sub)   # balanced tiles: avoid a mostly-padded tail
        Sp = _ceil_to(S, TS)

    # Grow the batch block to fill the budget, but never over-pad a small batch.
    bb_max = max(sub, (budget // (TS * row)) // sub * sub)
    Bp_min = _ceil_to(B, sub)
    BB = min(bb_max, Bp_min)

    # Megacore: keep >=2 batch-grid steps (prefer 4 when per-step tiles stay >=1 MiB) so
    # both TensorCores get a shard of this memory-bound op.
    if Bp_min > sub:
        grid_s = Sp // TS
        bb4 = max(sub, _ceil_to(_ceil_div(Bp_min, 4), sub))
        target = 4 if (grid_s == 1 and bb4 * TS * row >= (1 << 20)) else 2
        BB = min(BB, max(sub, _ceil_to(_ceil_div(Bp_min, target), sub)))

    Bp = _ceil_to(B, BB)
    return BB, Bp, TS, Sp


# ---------------------------------------------------------------------------
# Wrapper
# ---------------------------------------------------------------------------

@functools.partial(jax.jit, static_argnames=("x_block_budget_bytes",))
def attention_pooling(x, w, b, *, x_block_budget_bytes=None):
    """x: (B, S, E); w: (1, E) == nn.Linear(E,1).weight; b: (1,) -> pooled (B, E)."""
    B, S, E = x.shape
    elem = jnp.dtype(x.dtype).itemsize

    default_budget, vmem_cap = _vmem_budgets()
    budget = default_budget if x_block_budget_bytes is None else x_block_budget_bytes

    BB, Bp, TS, Sp = _choose_blocks(B, S, E, elem, budget)
    grid_b, grid_s = Bp // BB, Sp // TS
    single = (Sp == S) and (Sp == TS)          # one full, unpadded sequence tile

    # Pad batch (zero rows pool to 0, sliced off below) and sequence (masked in-kernel).
    if (Bp, Sp) != (B, S):
        x = jnp.pad(x, ((0, Bp - B), (0, Sp - S), (0, 0)))

    # Attention weight as a small resident (BB, 1, E) block in x's dtype (feeds the MXU
    # without upcasting the x tile); bias as an SMEM scalar.
    w_b = jnp.broadcast_to(jnp.reshape(w, (1, 1, E)), (BB, 1, E)).astype(x.dtype)
    b_vec = jnp.reshape(b, (1,)).astype(jnp.float32)

    # Double-buffered x + output + weight blocks (+ f32 scratch on the tiled path),
    # with slack for Mosaic internal scratch; clamped per generation.
    need = (2 * BB * TS * E * elem          # x blocks (double buffered)
            + 2 * BB * E * elem             # output blocks
            + 2 * BB * E * elem             # weight block
            + (0 if single else BB * E * 4 + 8 * BB * 4))
    vmem_limit = int(min(max(int(need * 1.5) + (4 << 20), 32 << 20), vmem_cap))

    if single:
        out = pl.pallas_call(
            _attn_pool_single_kernel,
            out_shape=jax.ShapeDtypeStruct((Bp, 1, E), x.dtype),
            grid_spec=pltpu.PrefetchScalarGridSpec(
                num_scalar_prefetch=0,
                grid=(grid_b,),
                in_specs=[
                    pl.BlockSpec((BB, TS, E), lambda i: (i, 0, 0)),
                    pl.BlockSpec((BB, 1, E), lambda i: (0, 0, 0)),
                    pl.BlockSpec(memory_space=pltpu.MemorySpace.SMEM),
                ],
                out_specs=pl.BlockSpec((BB, 1, E), lambda i: (i, 0, 0)),
            ),
            compiler_params=pltpu.CompilerParams(
                dimension_semantics=("parallel",),
                vmem_limit_bytes=vmem_limit,
            ),
        )(x, w_b, b_vec)
    else:
        kernel = functools.partial(_attn_pool_tiled_kernel,
                                   seq_len=S, seq_tile=TS, needs_mask=(Sp != S))
        out = pl.pallas_call(
            kernel,
            out_shape=jax.ShapeDtypeStruct((Bp, 1, E), x.dtype),
            grid_spec=pltpu.PrefetchScalarGridSpec(
                num_scalar_prefetch=0,
                grid=(grid_b, grid_s),
                in_specs=[
                    pl.BlockSpec((BB, TS, E), lambda i, s: (i, s, 0)),
                    pl.BlockSpec((BB, 1, E), lambda i, s: (0, 0, 0)),
                    pl.BlockSpec(memory_space=pltpu.MemorySpace.SMEM),
                ],
                out_specs=pl.BlockSpec((BB, 1, E), lambda i, s: (i, 0, 0)),
                scratch_shapes=[
                    pltpu.VMEM((BB, 1, 1), jnp.float32),   # running max
                    pltpu.VMEM((BB, 1, 1), jnp.float32),   # running denom
                    pltpu.VMEM((BB, 1, E), jnp.float32),   # f32 accumulator
                ],
            ),
            compiler_params=pltpu.CompilerParams(
                dimension_semantics=("parallel", "arbitrary"),
                vmem_limit_bytes=vmem_limit,
            ),
        )(x, w_b, b_vec)

    return out[:B, 0, :]


def reference(x, w, b):
    scores = jnp.einsum("bse,oe->bso", x, w) + b   # nn.Linear(E, 1)
    weights = jax.nn.softmax(scores, axis=1)       # softmax over the sequence dim
    return jnp.sum(x * weights, axis=1)            # (B, E)


if __name__ == "__main__":
    key = jax.random.PRNGKey(0)
    kx, kw, kb, kx2 = jax.random.split(key, 4)

    # Small shapes consistent with AttentionPooling: (batch, seq, emb).
    B, S, E = 2, 8, 32
    x = jax.random.normal(kx, (B, S, E), dtype=jnp.float32)

    # PyTorch-style Linear(E, 1) init: uniform(-1/sqrt(E), 1/sqrt(E)).
    bound = 1.0 / (E ** 0.5)
    w = jax.random.uniform(kw, (1, E), minval=-bound, maxval=bound, dtype=jnp.float32)
    b = jax.random.uniform(kb, (1,), minval=-bound, maxval=bound, dtype=jnp.float32)

    out = jax.block_until_ready(attention_pooling(x, w, b))
    ref = reference(x, w, b)
    assert out.shape == (B, E)
    assert jnp.allclose(out, ref, atol=1e-5, rtol=1e-5), float(jnp.max(jnp.abs(out - ref)))

    # Also exercise the online-softmax (tiled + masked) path: non-multiple-of-8 sequence
    # length with a deliberately tiny per-block budget to force sequence tiling.
    S2 = 40
    x2 = jax.random.normal(kx2, (B, S2, E), dtype=jnp.float32)
    out2 = jax.block_until_ready(attention_pooling(x2, w, b, x_block_budget_bytes=16 * 1024))
    ref2 = reference(x2, w, b)
    assert out2.shape == (B, E)
    assert jnp.allclose(out2, ref2, atol=1e-5, rtol=1e-5), float(jnp.max(jnp.abs(out2 - ref2)))

    print("KERNEL_OK")
</pallas_src>

<mosaic_0001>
module attributes {stable_mosaic.version = 11 : i64} {
  func.func @_attn_pool_single_kernel(%arg0: i32, %arg1: memref<8x8x32xf32, #tpu.memory_space<vmem>>, %arg2: memref<8x1x32xf32, #tpu.memory_space<vmem>>, %arg3: memref<1xf32, #tpu.memory_space<smem>>, %arg4: memref<8x1x32xf32, #tpu.memory_space<vmem>>) attributes {dimension_semantics = [#tpu.dimension_semantics<parallel>], iteration_bounds = array<i64: 1>, scalar_prefetch = 0 : i64, scratch_operands = 0 : i64, tpu.core_type = #tpu.core_type<tc>, window_params = [{transform_indices = @transform_0, window_bounds = array<i64: 8, 8, 32>}, {pipeline_mode = #tpu.pipeline_mode<synchronous>, transform_indices = @transform_1, window_bounds = array<i64: 8, 1, 32>}, {transform_indices = @transform_2, window_bounds = array<i64: 1>}, {transform_indices = @transform_3, window_bounds = array<i64: 8, 1, 32>}]} {
    %c0 = arith.constant 0 : index
    %c0_0 = arith.constant 0 : index
    %c0_1 = arith.constant 0 : index
    %0 = vector.load %arg1[%c0, %c0_0, %c0_1] : memref<8x8x32xf32, #tpu.memory_space<vmem>>, vector<8x8x32xf32>
    %c0_2 = arith.constant 0 : index
    %c0_3 = arith.constant 0 : index
    %c0_4 = arith.constant 0 : index
    %1 = vector.load %arg2[%c0_2, %c0_3, %c0_4] : memref<8x1x32xf32, #tpu.memory_space<vmem>>, vector<8x1x32xf32>
    %c0_5 = arith.constant 0 : index
    %2 = memref.load %arg3[%c0_5] : memref<1xf32, #tpu.memory_space<smem>>
    "tpu.trace_start"() <{level = 10 : i32, message = "bqe,bse->bqs"}> : () -> ()
    %cst = arith.constant dense<0.000000e+00> : vector<8x1x8xf32>
    %3 = tpu.matmul %1, %0, %cst {dimension_numbers = #tpu.dot_dimension_numbers<[2], [2], [1], [1], [0, 0, 0, 1, 1, 1], [0], [0]>} : vector<8x1x32xf32>, vector<8x8x32xf32>, vector<8x1x8xf32> -> vector<8x1x8xf32>
    "tpu.trace_stop"() : () -> ()
    %4 = vector.broadcast %2 : f32 to vector<8x1x8xf32>
    %5 = arith.addf %3, %4 : vector<8x1x8xf32>
    %cst_6 = arith.constant dense<0xFF800000> : vector<8x1xf32>
    %6 = vector.multi_reduction <maximumf>, %5, %cst_6 [2] : vector<8x1x8xf32> to vector<8x1xf32>
    %7 = vector.shape_cast %6 : vector<8x1xf32> to vector<8x1x1xf32>
    %8 = vector.broadcast %7 : vector<8x1x1xf32> to vector<8x1x8xf32>
    %9 = arith.subf %5, %8 : vector<8x1x8xf32>
    %10 = math.exp %9 : vector<8x1x8xf32>
    %cst_7 = arith.constant dense<0.000000e+00> : vector<8x1xf32>
    %11 = vector.multi_reduction <add>, %10, %cst_7 [2] : vector<8x1x8xf32> to vector<8x1xf32>
    %12 = vector.shape_cast %11 : vector<8x1xf32> to vector<8x1x1xf32>
    "tpu.trace_start"() <{level = 10 : i32, message = "bqs,bse->bqe"}> : () -> ()
    %cst_8 = arith.constant dense<0.000000e+00> : vector<8x1x32xf32>
    %13 = tpu.matmul %10, %0, %cst_8 {dimension_numbers = #tpu.dot_dimension_numbers<[2], [1], [1], [2], [0, 0, 0, 1, 1, 2], [0], [0]>} : vector<8x1x8xf32>, vector<8x8x32xf32>, vector<8x1x32xf32> -> vector<8x1x32xf32>
    "tpu.trace_stop"() : () -> ()
    %14 = tpu.reciprocal %12 : vector<8x1x1xf32> -> vector<8x1x1xf32>
    %15 = vector.broadcast %14 : vector<8x1x1xf32> to vector<8x1x32xf32>
    %16 = arith.mulf %13, %15 : vector<8x1x32xf32>
    %c0_9 = arith.constant 0 : index
    %c0_10 = arith.constant 0 : index
    %c0_11 = arith.constant 0 : index
    %17 = vector.load %arg4[%c0_9, %c0_10, %c0_11] : memref<8x1x32xf32, #tpu.memory_space<vmem>>, vector<8x1x32xf32>
    tpu.vector_store %arg4[%c0_9, %c0_10, %c0_11], %16 {strides = array<i32>} : memref<8x1x32xf32, #tpu.memory_space<vmem>>, vector<8x1x32xf32>,
    return
  }
  func.func @transform_0(%arg0: i32) -> (i32, i32, i32) {
    %c0_i32 = arith.constant 0 : i32
    %c0_i32_0 = arith.constant 0 : i32
    %c0_i32_1 = arith.constant 0 : i32
    return %arg0, %c0_i32, %c0_i32_0 : i32, i32, i32
  }
  func.func @transform_1(%arg0: i32) -> (i32, i32, i32) {
    %c0_i32 = arith.constant 0 : i32
    %c0_i32_0 = arith.constant 0 : i32
    %c0_i32_1 = arith.constant 0 : i32
    %c0_i32_2 = arith.constant 0 : i32
    return %c0_i32, %c0_i32_0, %c0_i32_1 : i32, i32, i32
  }
  func.func @transform_2(%arg0: i32) -> i32 {
    %c0_i32 = arith.constant 0 : i32
    %c0_i32_0 = arith.constant 0 : i32
    return %c0_i32 : i32
  }
  func.func @transform_3(%arg0: i32) -> (i32, i32, i32) {
    %c0_i32 = arith.constant 0 : i32
    %c0_i32_0 = arith.constant 0 : i32
    %c0_i32_1 = arith.constant 0 : i32
    return %arg0, %c0_i32, %c0_i32_0 : i32, i32, i32
  }
}

</mosaic_0001>

<llo_original>
// kernel: attention_pooling.1
$region0: #{attention_pooling.1}
  #allocation0 [shape = 'u32[]', space=smem, size = 0x4, offset = 0x4, fixed_abs, tag = 'smem constant byte address 0x4 - core index']
  #allocation1 [shape = 'u32[144,128]{1,0:T(1,128)}', space=vmem, size = 0x12000, scoped, tag = 'internal scratch']
  #allocation2 [shape = 'f32[1]{0:T(128)S(6)}', space=smem, size = 0x200, scoped, tag = 'scoped memory for attention_pooling.1']
  %s0 = inlined_call_operand.vmem [shape: f32[8,8,32], index: 0, kind: input, shape index: {}]
  %s1 = inlined_call_operand.vmem [shape: f32[8,1,32], index: 1, kind: input, shape index: {}]
  %s2 = inlined_call_operand.<no memory space> [shape: f32[1], index: 2, kind: input, shape index: {}]
  %s3 = inlined_call_operand.vmem [shape: f32[8,1,32], index: 3, kind: output, shape index: {}]
  %s4 = sld [smem:[#allocation0]]
  $region22: #{attention_pooling.1} parent=0
    _
  %s6 = ssub.s32 1, %s4
  %s7 = scalar_select 0, %s6, %s4
  %8 = sst [smem:[#allocation2]] %s2
  // Predicated region
  $region2: #{attention_pooling.1} parent=0 // pred_check
    _
  $region3: #{attention_pooling.1} parent=0 // pred_check_branch
    %10 = sbr.rel (0) target = $region5
  $region4: #{attention_pooling.1} parent=0 // pred_region
    _
  $region5: #{attention_pooling.1} parent=0 // pred_fallthru
    _
  // Predicated region
  $region6: #{attention_pooling.1} parent=0 // pred_check
    _
  $region7: #{attention_pooling.1} parent=0 // pred_check_branch
    %12 = sbr.rel (0) target = $region9
  $region8: #{attention_pooling.1} parent=0 // pred_region
    _
  $region9: #{attention_pooling.1} parent=0 // pred_fallthru
    _
  // Predicated region
  $region10: #{attention_pooling.1} parent=0 // pred_check
    _
  $region11: #{attention_pooling.1} parent=0 // pred_check_branch
    %14 = sbr.rel (0) target = $region13
  $region12: #{attention_pooling.1} parent=0 // pred_region
    _
  $region13: #{attention_pooling.1} parent=0 // pred_fallthru
    _
  %v15 = vld [vmem:[%s0] sm:$0xff]
  %v16 = vld [vmem:[%s0 + $0x8] sm:$0xff]
  %v17 = vld [vmem:[%s0 + $0x10] sm:$0xff]
  %v18 = vld [vmem:[%s0 + $0x18] sm:$0xff]
  %v19 = vld [vmem:[%s0 + $0x20] sm:$0xff]
  %v20 = vld [vmem:[%s0 + $0x28] sm:$0xff]
  %v21 = vld [vmem:[%s0 + $0x30] sm:$0xff]
  %v22 = vld [vmem:[%s0 + $0x38] sm:$0xff]
  %v23 = vld [vmem:[%s1] sm:$0x1]
  %v24 = vld [vmem:[%s1 + $0x1] sm:$0x1]
  %v25 = vld [vmem:[%s1 + $0x2] sm:$0x1]
  %v26 = vld [vmem:[%s1 + $0x3] sm:$0x1]
  %v27 = vld [vmem:[%s1 + $0x4] sm:$0x1]
  %v28 = vld [vmem:[%s1 + $0x5] sm:$0x1]
  %v29 = vld [vmem:[%s1 + $0x6] sm:$0x1]
  %v30 = vld [vmem:[%s1 + $0x7] sm:$0x1]
  %s31 = sld [smem:[#allocation2]]
  %v32 = vstv %s31
  %vm33 = vcmask 261120
  %v35 = vsel %vm33, %v23, 0
  %v38 = vsel %vm33, %v15, 0
  %40 = vmatprep.subr.mxu0 0.0
  %41 = vmatpush1.xpose.msra.mxu0 0.0
  %42 = vmatprep.subr.mxu0 0.0
  %43 = vmatpush1.xpose.msra.mxu0 0.0
  %44 = vmatprep.subr.mxu0 0.0
  %45 = vmatpush1.xpose.msra.mxu0 0.0
  %46 = vmatprep.subr.mxu0 0.0
  %47 = vmatpush1.xpose.msra.mxu0 0.0
  %48 = vmatprep.subr.mxu0 0.0
  %49 = vmatpush1.xpose.msra.mxu0 0.0
  %50 = vmatprep.subr.mxu0 0.0
  %51 = vmatpush1.xpose.msra.mxu0 0.0
  %52 = vmatprep.subr.mxu0 0.0
  %53 = vmatpush1.xpose.msra.mxu0 0.0
  %54 = vmatprep.subr.mxu0 0.0
  %55 = vmatpush1.xpose.msra.mxu0 0.0
  %56 = vmatprep.subr.mxu0 0.0
  %57 = vmatpush1.xpose.msra.mxu0 0.0
  %58 = vmatprep.subr.mxu0 0.0
  %59 = vmatpush1.xpose.msra.mxu0 0.0
  %60 = vmatprep.subr.mxu0 0.0
  %61 = vmatpush1.xpose.msra.mxu0 0.0
  %62 = vmatprep.subr.mxu0 0.0
  %63 = vmatpush1.xpose.msra.mxu0 0.0
  %64 = vmatprep.subr.mxu0 0.0
  %65 = vmatpush1.xpose.msra.mxu0 0.0
  %66 = vmatprep.subr.mxu0 0.0
  %67 = vmatpush1.xpose.msra.mxu0 0.0
  %68 = vmatprep.subr.mxu0 0.0
  %69 = vmatpush1.xpose.msra.mxu0 0.0
  %70 = vmatprep.subr.mxu0 0.0
  %71 = vmatpush1.xpose.msra.mxu0 %v38
  %72 = vmatprep.subr.mxu0 0.0
  %73 = vmatpush2.xpose.msra.mxu0 0.0
  %74 = vmatprep.subr.mxu0 0.0
  %75 = vmatpush2.xpose.msra.mxu0 0.0
  %76 = vmatprep.subr.mxu0 0.0
  %77 = vmatpush2.xpose.msra.mxu0 0.0
  %78 = vmatprep.subr.mxu0 0.0
  %79 = vmatpush2.xpose.msra.mxu0 0.0
  %80 = vmatprep.subr.mxu0 0.0
  %81 = vmatpush2.xpose.msra.mxu0 0.0
  %82 = vmatprep.subr.mxu0 0.0
  %83 = vmatpush2.xpose.msra.mxu0 0.0
  %84 = vmatprep.subr.mxu0 0.0
  %85 = vmatpush2.xpose.msra.mxu0 0.0
  %86 = vmatprep.subr.mxu0 0.0
  %87 = vmatpush2.xpose.msra.mxu0 0.0
  %88 = vmatprep.subr.mxu0 0.0
  %89 = vmatpush2.xpose.msra.mxu0 0.0
  %90 = vmatprep.subr.mxu0 0.0
  %91 = vmatpush2.xpose.msra.mxu0 0.0
  %92 = vmatprep.subr.mxu0 0.0
  %93 = vmatpush2.xpose.msra.mxu0 0.0
  %94 = vmatprep.subr.mxu0 0.0
  %95 = vmatpush2.xpose.msra.mxu0 0.0
  %96 = vmatprep.subr.mxu0 0.0
  %97 = vmatpush2.xpose.msra.mxu0 0.0
  %98 = vmatprep.subr.mxu0 0.0
  %99 = vmatpush2.xpose.msra.mxu0 0.0
  %100 = vmatprep.subr.mxu0 0.0
  %101 = vmatpush2.xpose.msra.mxu0 0.0
  %102 = vmatprep.subr.mxu0 0.0
  %103 = vmatpush2.xpose.msra.mxu0 0.0
  %104 = vmatprep.mubr.f32.mxu0 0.0
  %105 = vmatmul.mubr.f32.gmra.mxu0 %v35
  %v106 = vpop.f32.mrf.mxu0
  %v107 = vadd.f32 %v32, %v106
  %v108 = vpop.f32.mrf.mxu0
  %109 = vdwg.mxu0
  %v111 = vsel %vm33, %v24, 0
  %v114 = vsel %vm33, %v16, 0
  %116 = vmatprep.subr.mxu0 0.0
  %117 = vmatpush1.xpose.msra.mxu0 0.0
  %118 = vmatprep.subr.mxu0 0.0
  %119 = vmatpush1.xpose.msra.mxu0 0.0
  %120 = vmatprep.subr.mxu0 0.0
  %121 = vmatpush1.xpose.msra.mxu0 0.0
  %122 = vmatprep.subr.mxu0 0.0
  %123 = vmatpush1.xpose.msra.mxu0 0.0
  %124 = vmatprep.subr.mxu0 0.0
  %125 = vmatpush1.xpose.msra.mxu0 0.0
  %126 = vmatprep.subr.mxu0 0.0
  %127 = vmatpush1.xpose.msra.mxu0 0.0
  %128 = vmatprep.subr.mxu0 0.0
  %129 = vmatpush1.xpose.msra.mxu0 0.0
  %130 = vmatprep.subr.mxu0 0.0
  %131 = vmatpush1.xpose.msra.mxu0 0.0
  %132 = vmatprep.subr.mxu0 0.0
  %133 = vmatpush1.xpose.msra.mxu0 0.0
  %134 = vmatprep.subr.mxu0 0.0
  %135 = vmatpush1.xpose.msra.mxu0 0.0
  %136 = vmatprep.subr.mxu0 0.0
  %137 = vmatpush1.xpose.msra.mxu0 0.0
  %138 = vmatprep.subr.mxu0 0.0
  %139 = vmatpush1.xpose.msra.mxu0 0.0
  %140 = vmatprep.subr.mxu0 0.0
  %141 = vmatpush1.xpose.msra.mxu0 0.0
  %142 = vmatprep.subr.mxu0 0.0
  %143 = vmatpush1.xpose.msra.mxu0 0.0
  %144 = vmatprep.subr.mxu0 0.0
  %145 = vmatpush1.xpose.msra.mxu0 0.0
  %146 = vmatprep.subr.mxu0 0.0
  %147 = vmatpush1.xpose.msra.mxu0 %v114
  %148 = vmatprep.subr.mxu0 0.0
  %149 = vmatpush2.xpose.msra.mxu0 0.0
  %150 = vmatprep.subr.mxu0 0.0
  %151 = vmatpush2.xpose.msra.mxu0 0.0
  %152 = vmatprep.subr.mxu0 0.0
  %153 = vmatpush2.xpose.msra.mxu0 0.0
  %154 = vmatprep.subr.mxu0 0.0
  %155 = vmatpush2.xpose.msra.mxu0 0.0
  %156 = vmatprep.subr.mxu0 0.0
  %157 = vmatpush2.xpose.msra.mxu0 0.0
  %158 = vmatprep.subr.mxu0 0.0
  %159 = vmatpush2.xpose.msra.mxu0 0.0
  %160 = vmatprep.subr.mxu0 0.0
  %161 = vmatpush2.xpose.msra.mxu0 0.0
  %162 = vmatprep.subr.mxu0 0.0
  %163 = vmatpush2.xpose.msra.mxu0 0.0
  %164 = vmatprep.subr.mxu0 0.0
  %165 = vmatpush2.xpose.msra.mxu0 0.0
  %166 = vmatprep.subr.mxu0 0.0
  %167 = vmatpush2.xpose.msra.mxu0 0.0
  %168 = vmatprep.subr.mxu0 0.0
  %169 = vmatpush2.xpose.msra.mxu0 0.0
  %170 = vmatprep.subr.mxu0 0.0
  %171 = vmatpush2.xpose.msra.mxu0 0.0
  %172 = vmatprep.subr.mxu0 0.0
  %173 = vmatpush2.xpose.msra.mxu0 0.0
  %174 = vmatprep.subr.mxu0 0.0
  %175 = vmatpush2.xpose.msra.mxu0 0.0
  %176 = vmatprep.subr.mxu0 0.0
  %177 = vmatpush2.xpose.msra.mxu0 0.0
  %178 = vmatprep.subr.mxu0 0.0
  %179 = vmatpush2.xpose.msra.mxu0 0.0
  %180 = vmatprep.mubr.f32.mxu0 0.0
  %181 = vmatmul.mubr.f32.gmra.mxu0 %v111
  %v182 = vpop.f32.mrf.mxu0
  %v183 = vadd.f32 %v32, %v182
  %v184 = vpop.f32.mrf.mxu0
  %185 = vdwg.mxu0
  %v187 = vsel %vm33, %v25, 0
  %v190 = vsel %vm33, %v17, 0
  %192 = vmatprep.subr.mxu0 0.0
  %193 = vmatpush1.xpose.msra.mxu0 0.0
  %194 = vmatprep.subr.mxu0 0.0
  %195 = vmatpush1.xpose.msra.mxu0 0.0
  %196 = vmatprep.subr.mxu0 0.0
  %197 = vmatpush1.xpose.msra.mxu0 0.0
  %198 = vmatprep.subr.mxu0 0.0
  %199 = vmatpush1.xpose.msra.mxu0 0.0
  %200 = vmatprep.subr.mxu0 0.0
  %201 = vmatpush1.xpose.msra.mxu0 0.0
  %202 = vmatprep.subr.mxu0 0.0
  %203 = vmatpush1.xpose.msra.mxu0 0.0
  %204 = vmatprep.subr.mxu0 0.0
  %205 = vmatpush1.xpose.msra.mxu0 0.0
  %206 = vmatprep.subr.mxu0 0.0
  %207 = vmatpush1.xpose.msra.mxu0 0.0
  %208 = vmatprep.subr.mxu0 0.0
  %209 = vmatpush1.xpose.msra.mxu0 0.0
  %210 = vmatprep.subr.mxu0 0.0
  %211 = vmatpush1.xpose.msra.mxu0 0.0
  %212 = vmatprep.subr.mxu0 0.0
  %213 = vmatpush1.xpose.msra.mxu0 0.0
  %214 = vmatprep.subr.mxu0 0.0
  %215 = vmatpush1.xpose.msra.mxu0 0.0
  %216 = vmatprep.subr.mxu0 0.0
  %217 = vmatpush1.xpose.msra.mxu0 0.0
  %218 = vmatprep.subr.mxu0 0.0
  %219 = vmatpush1.xpose.msra.mxu0 0.0
  %220 = vmatprep.subr.mxu0 0.0
  %221 = vmatpush1.xpose.msra.mxu0 0.0
  %222 = vmatprep.subr.mxu0 0.0
  %223 = vmatpush1.xpose.msra.mxu0 %v190
  %224 = vmatprep.subr.mxu0 0.0
  %225 = vmatpush2.xpose.msra.mxu0 0.0
  %226 = vmatprep.subr.mxu0 0.0
  %227 = vmatpush2.xpose.msra.mxu0 0.0
  %228 = vmatprep.subr.mxu0 0.0
  %229 = vmatpush2.xpose.msra.mxu0 0.0
  %230 = vmatprep.subr.mxu0 0.0
  %231 = vmatpush2.xpose.msra.mxu0 0.0
  %232 = vmatprep.subr.mxu0 0.0
  %233 = vmatpush2.xpose.msra.mxu0 0.0
  %234 = vmatprep.subr.mxu0 0.0
  %235 = vmatpush2.xpose.msra.mxu0 0.0
  %236 = vmatprep.subr.mxu0 0.0
  %237 = vmatpush2.xpose.msra.mxu0 0.0
  %238 = vmatprep.subr.mxu0 0.0
  %239 = vmatpush2.xpose.msra.mxu0 0.0
  %240 = vmatprep.subr.mxu0 0.0
  %241 = vmatpush2.xpose.msra.mxu0 0.0
  %242 = vmatprep.subr.mxu0 0.0
  %243 = vmatpush2.xpose.msra.mxu0 0.0
  %244 = vmatprep.subr.mxu0 0.0
  %245 = vmatpush2.xpose.msra.mxu0 0.0
  %246 = vmatprep.subr.mxu0 0.0
  %247 = vmatpush2.xpose.msra.mxu0 0.0
  %248 = vmatprep.subr.mxu0 0.0
  %249 = vmatpush2.xpose.msra.mxu0 0.0
  %250 = vmatprep.subr.mxu0 0.0
  %251 = vmatpush2.xpose.msra.mxu0 0.0
  %252 = vmatprep.subr.mxu0 0.0
  %253 = vmatpush2.xpose.msra.mxu0 0.0
  %254 = vmatprep.subr.mxu0 0.0
  %255 = vmatpush2.xpose.msra.mxu0 0.0
  %256 = vmatprep.mubr.f32.mxu0 0.0
  %257 = vmatmul.mubr.f32.gmra.mxu0 %v187
  %v258 = vpop.f32.mrf.mxu0
  %v259 = vadd.f32 %v32, %v258
  %v260 = vpop.f32.mrf.mxu0
  %261 = vdwg.mxu0
  %v263 = vsel %vm33, %v26, 0
  %v266 = vsel %vm33, %v18, 0
  %268 = vmatprep.subr.mxu0 0.0
  %269 = vmatpush1.xpose.msra.mxu0 0.0
  %270 = vmatprep.subr.mxu0 0.0
  %271 = vmatpush1.xpose.msra.mxu0 0.0
  %272 = vmatprep.subr.mxu0 0.0
  %273 = vmatpush1.xpose.msra.mxu0 0.0
  %274 = vmatprep.subr.mxu0 0.0
  %275 = vmatpush1.xpose.msra.mxu0 0.0
  %276 = vmatprep.subr.mxu0 0.0
  %277 = vmatpush1.xpose.msra.mxu0 0.0
  %278 = vmatprep.subr.mxu0 0.0
  %279 = vmatpush1.xpose.msra.mxu0 0.0
  %280 = vmatprep.subr.mxu0 0.0
  %281 = vmatpush1.xpose.msra.mxu0 0.0
  %282 = vmatprep.subr.mxu0 0.0
  %283 = vmatpush1.xpose.msra.mxu0 0.0
  %284 = vmatprep.subr.mxu0 0.0
  %285 = vmatpush1.xpose.msra.mxu0 0.0
  %286 = vmatprep.subr.mxu0 0.0
  %287 = vmatpush1.xpose.msra.mxu0 0.0
  %288 = vmatprep.subr.mxu0 0.0
  %289 = vmatpush1.xpose.msra.mxu0 0.0
  %290 = vmatprep.subr.mxu0 0.0
  %291 = vmatpush1.xpose.msra.mxu0 0.0
  %292 = vmatprep.subr.mxu0 0.0
  %293 = vmatpush1.xpose.msra.mxu0 0.0
  %294 = vmatprep.subr.mxu0 0.0
  %295 = vmatpush1.xpose.msra.mxu0 0.0
  %296 = vmatprep.subr.mxu0 0.0
  %297 = vmatpush1.xpose.msra.mxu0 0.0
  %298 = vmatprep.subr.mxu0 0.0
  %299 = vmatpush1.xpose.msra.mxu0 %v266
  %300 = vmatprep.subr.mxu0 0.0
  %301 = vmatpush2.xpose.msra.mxu0 0.0
  %302 = vmatprep.subr.mxu0 0.0
  %303 = vmatpush2.xpose.msra.mxu0 0.0
  %304 = vmatprep.subr.mxu0 0.0
  %305 = vmatpush2.xpose.msra.mxu0 0.0
  %306 = vmatprep.subr.mxu0 0.0
  %307 = vmatpush2.xpose.msra.mxu0 0.0
  %308 = vmatprep.subr.mxu0 0.0
  %309 = vmatpush2.xpose.msra.mxu0 0.0
  %310 = vmatprep.subr.mxu0 0.0
  %311 = vmatpush2.xpose.msra.mxu0 0.0
  %312 = vmatprep.subr.mxu0 0.0
  %313 = vmatpush2.xpose.msra.mxu0 0.0
  %314 = vmatprep.subr.mxu0 0.0
  %315 = vmatpush2.xpose.msra.mxu0 0.0
  %316 = vmatprep.subr.mxu0 0.0
  %317 = vmatpush2.xpose.msra.mxu0 0.0
  %318 = vmatprep.subr.mxu0 0.0
  %319 = vmatpush2.xpose.msra.mxu0 0.0
  %320 = vmatprep.subr.mxu0 0.0
  %321 = vmatpush2.xpose.msra.mxu0 0.0
  %322 = vmatprep.subr.mxu0 0.0
  %323 = vmatpush2.xpose.msra.mxu0 0.0
  %324 = vmatprep.subr.mxu0 0.0
  %325 = vmatpush2.xpose.msra.mxu0 0.0
  %326 = vmatprep.subr.mxu0 0.0
  %327 = vmatpush2.xpose.msra.mxu0 0.0
  %328 = vmatprep.subr.mxu0 0.0
  %329 = vmatpush2.xpose.msra.mxu0 0.0
  %330 = vmatprep.subr.mxu0 0.0
  %331 = vmatpush2.xpose.msra.mxu0 0.0
  %332 = vmatprep.mubr.f32.mxu0 0.0
  %333 = vmatmul.mubr.f32.gmra.mxu0 %v263
  %v334 = vpop.f32.mrf.mxu0
  %v335 = vadd.f32 %v32, %v334
  %v336 = vpop.f32.mrf.mxu0
  %337 = vdwg.mxu0
  %v339 = vsel %vm33, %v27, 0
  %v342 = vsel %vm33, %v19, 0
  %344 = vmatprep.subr.mxu0 0.0
  %345 = vmatpush1.xpose.msra.mxu0 0.0
  %346 = vmatprep.subr.mxu0 0.0
  %347 = vmatpush1.xpose.msra.mxu0 0.0
  %348 = vmatprep.subr.mxu0 0.0
  %349 = vmatpush1.xpose.msra.mxu0 0.0
  %350 = vmatprep.subr.mxu0 0.0
  %351 = vmatpush1.xpose.msra.mxu0 0.0
  %352 = vmatprep.subr.mxu0 0.0
  %353 = vmatpush1.xpose.msra.mxu0 0.0
  %354 = vmatprep.subr.mxu0 0.0
  %355 = vmatpush1.xpose.msra.mxu0 0.0
  %356 = vmatprep.subr.mxu0 0.0
  %357 = vmatpush1.xpose.msra.mxu0 0.0
  %358 = vmatprep.subr.mxu0 0.0
  %359 = vmatpush1.xpose.msra.mxu0 0.0
  %360 = vmatprep.subr.mxu0 0.0
  %361 = vmatpush1.xpose.msra.mxu0 0.0
  %362 = vmatprep.subr.mxu0 0.0
  %363 = vmatpush1.xpose.msra.mxu0 0.0
  %364 = vmatprep.subr.mxu0 0.0
  %365 = vmatpush1.xpose.msra.mxu0 0.0
  %366 = vmatprep.subr.mxu0 0.0
  %367 = vmatpush1.xpose.msra.mxu0 0.0
  %368 = vmatprep.subr.mxu0 0.0
  %369 = vmatpush1.xpose.msra.mxu0 0.0
  %370 = vmatprep.subr.mxu0 0.0
  %371 = vmatpush1.xpose.msra.mxu0 0.0
  %372 = vmatprep.subr.mxu0 0.0
  %373 = vmatpush1.xpose.msra.mxu0 0.0
  %374 = vmatprep.subr.mxu0 0.0
  %375 = vmatpush1.xpose.msra.mxu0 %v342
  %376 = vmatprep.subr.mxu0 0.0
  %377 = vmatpush2.xpose.msra.mxu0 0.0
  %378 = vmatprep.subr.mxu0 0.0
  %379 = vmatpush2.xpose.msra.mxu0 0.0
  %380 = vmatprep.subr.mxu0 0.0
  %381 = vmatpush2.xpose.msra.mxu0 0.0
  %382 = vmatprep.subr.mxu0 0.0
  %383 = vmatpush2.xpose.msra.mxu0 0.0
  %384 = vmatprep.subr.mxu0 0.0
  %385 = vmatpush2.xpose.msra.mxu0 0.0
  %386 = vmatprep.subr.mxu0 0.0
  %387 = vmatpush2.xpose.msra.mxu0 0.0
  %388 = vmatprep.subr.mxu0 0.0
  %389 = vmatpush2.xpose.msra.mxu0 0.0
  %390 = vmatprep.subr.mxu0 0.0
  %391 = vmatpush2.xpose.msra.mxu0 0.0
  %392 = vmatprep.subr.mxu0 0.0
  %393 = vmatpush2.xpose.msra.mxu0 0.0
  %394 = vmatprep.subr.mxu0 0.0
  %395 = vmatpush2.xpose.msra.mxu0 0.0
  %396 = vmatprep.subr.mxu0 0.0
  %397 = vmatpush2.xpose.msra.mxu0 0.0
  %398 = vmatprep.subr.mxu0 0.0
  %399 = vmatpush2.xpose.msra.mxu0 0.0
  %400 = vmatprep.subr.mxu0 0.0
  %401 = vmatpush2.xpose.msra.mxu0 0.0
  %402 = vmatprep.subr.mxu0 0.0
  %403 = vmatpush2.xpose.msra.mxu0 0.0
  %404 = vmatprep.subr.mxu0 0.0
  %405 = vmatpush2.xpose.msra.mxu0 0.0
  %406 = vmatprep.subr.mxu0 0.0
  %407 = vmatpush2.xpose.msra.mxu0 0.0
  %408 = vmatprep.mubr.f32.mxu0 0.0
  %409 = vmatmul.mubr.f32.gmra.mxu0 %v339
  %v410 = vpop.f32.mrf.mxu0
  %v411 = vadd.f32 %v32, %v410
  %v412 = vpop.f32.mrf.mxu0
  %413 = vdwg.mxu0
  %v415 = vsel %vm33, %v28, 0
  %v418 = vsel %vm33, %v20, 0
  %420 = vmatprep.subr.mxu0 0.0
  %421 = vmatpush1.xpose.msra.mxu0 0.0
  %422 = vmatprep.subr.mxu0 0.0
  %423 = vmatpush1.xpose.msra.mxu0 0.0
  %424 = vmatprep.subr.mxu0 0.0
  %425 = vmatpush1.xpose.msra.mxu0 0.0
  %426 = vmatprep.subr.mxu0 0.0
  %427 = vmatpush1.xpose.msra.mxu0 0.0
  %428 = vmatprep.subr.mxu0 0.0
  %429 = vmatpush1.xpose.msra.mxu0 0.0
  %430 = vmatprep.subr.mxu0 0.0
  %431 = vmatpush1.xpose.msra.mxu0 0.0
  %432 = vmatprep.subr.mxu0 0.0
  %433 = vmatpush1.xpose.msra.mxu0 0.0
  %434 = vmatprep.subr.mxu0 0.0
  %435 = vmatpush1.xpose.msra.mxu0 0.0
  %436 = vmatprep.subr.mxu0 0.0
  %437 = vmatpush1.xpose.msra.mxu0 0.0
  %438 = vmatprep.subr.mxu0 0.0
  %439 = vmatpush1.xpose.msra.mxu0 0.0
  %440 = vmatprep.subr.mxu0 0.0
  %441 = vmatpush1.xpose.msra.mxu0 0.0
  %442 = vmatprep.subr.mxu0 0.0
  %443 = vmatpush1.xpose.msra.mxu0 0.0
  %444 = vmatprep.subr.mxu0 0.0
  %445 = vmatpush1.xpose.msra.mxu0 0.0
  %446 = vmatprep.subr.mxu0 0.0
  %447 = vmatpush1.xpose.msra.mxu0 0.0
  %448 = vmatprep.subr.mxu0 0.0
  %449 = vmatpush1.xpose.msra.mxu0 0.0
  %450 = vmatprep.subr.mxu0 0.0
  %451 = vmatpush1.xpose.msra.mxu0 %v418
  %452 = vmatprep.subr.mxu0 0.0
  %453 = vmatpush2.xpose.msra.mxu0 0.0
  %454 = vmatprep.subr.mxu0 0.0
  %455 = vmatpush2.xpose.msra.mxu0 0.0
  %456 = vmatprep.subr.mxu0 0.0
  %457 = vmatpush2.xpose.msra.mxu0 0.0
  %458 = vmatprep.subr.mxu0 0.0
  %459 = vmatpush2.xpose.msra.mxu0 0.0
  %460 = vmatprep.subr.mxu0 0.0
  %461 = vmatpush2.xpose.msra.mxu0 0.0
  %462 = vmatprep.subr.mxu0 0.0
  %463 = vmatpush2.xpose.msra.mxu0 0.0
  %464 = vmatprep.subr.mxu0 0.0
  %465 = vmatpush2.xpose.msra.mxu0 0.0
  %466 = vmatprep.subr.mxu0 0.0
  %467 = vmatpush2.xpose.msra.mxu0 0.0
  %468 = vmatprep.subr.mxu0 0.0
  %469 = vmatpush2.xpose.msra.mxu0 0.0
  %470 = vmatprep.subr.mxu0 0.0
  %471 = vmatpush2.xpose.msra.mxu0 0.0
  %472 = vmatprep.subr.mxu0 0.0
  %473 = vmatpush2.xpose.msra.mxu0 0.0
  %474 = vmatprep.subr.mxu0 0.0
  %475 = vmatpush2.xpose.msra.mxu0 0.0
  %476 = vmatprep.subr.mxu0 0.0
  %477 = vmatpush2.xpose.msra.mxu0 0.0
  %478 = vmatprep.subr.mxu0 0.0
  %479 = vmatpush2.xpose.msra.mxu0 0.0
  %480 = vmatprep.subr.mxu0 0.0
  %481 = vmatpush2.xpose.msra.mxu0 0.0
  %482 = vmatprep.subr.mxu0 0.0
  %483 = vmatpush2.xpose.msra.mxu0 0.0
  %484 = vmatprep.mubr.f32.mxu0 0.0
  %485 = vmatmul.mubr.f32.gmra.mxu0 %v415
  %v486 = vpop.f32.mrf.mxu0
  %v487 = vadd.f32 %v32, %v486
  %v488 = vpop.f32.mrf.mxu0
  %489 = vdwg.mxu0
  %v491 = vsel %vm33, %v29, 0
  %v494 = vsel %vm33, %v21, 0
  %496 = vmatprep.subr.mxu0 0.0
  %497 = vmatpush1.xpose.msra.mxu0 0.0
  %498 = vmatprep.subr.mxu0 0.0
  %499 = vmatpush1.xpose.msra.mxu0 0.0
  %500 = vmatprep.subr.mxu0 0.0
  %501 = vmatpush1.xpose.msra.mxu0 0.0
  %502 = vmatprep.subr.mxu0 0.0
  %503 = vmatpush1.xpose.msra.mxu0 0.0
  %504 = vmatprep.subr.mxu0 0.0
  %505 = vmatpush1.xpose.msra.mxu0 0.0
  %506 = vmatprep.subr.mxu0 0.0
  %507 = vmatpush1.xpose.msra.mxu0 0.0
  %508 = vmatprep.subr.mxu0 0.0
  %509 = vmatpush1.xpose.msra.mxu0 0.0
  %510 = vmatprep.subr.mxu0 0.0
  %511 = vmatpush1.xpose.msra.mxu0 0.0
  %512 = vmatprep.subr.mxu0 0.0
  %513 = vmatpush1.xpose.msra.mxu0 0.0
  %514 = vmatprep.subr.mxu0 0.0
  %515 = vmatpush1.xpose.msra.mxu0 0.0
  %516 = vmatprep.subr.mxu0 0.0
  %517 = vmatpush1.xpose.msra.mxu0 0.0
  %518 = vmatprep.subr.mxu0 0.0
  %519 = vmatpush1.xpose.msra.mxu0 0.0
  %520 = vmatprep.subr.mxu0 0.0
  %521 = vmatpush1.xpose.msra.mxu0 0.0
  %522 = vmatprep.subr.mxu0 0.0
  %523 = vmatpush1.xpose.msra.mxu0 0.0
  %524 = vmatprep.subr.mxu0 0.0
  %525 = vmatpush1.xpose.msra.mxu0 0.0
  %526 = vmatprep.subr.mxu0 0.0
  %527 = vmatpush1.xpose.msra.mxu0 %v494
  %528 = vmatprep.subr.mxu0 0.0
  %529 = vmatpush2.xpose.msra.mxu0 0.0
  %530 = vmatprep.subr.mxu0 0.0
  %531 = vmatpush2.xpose.msra.mxu0 0.0
  %532 = vmatprep.subr.mxu0 0.0
  %533 = vmatpush2.xpose.msra.mxu0 0.0
  %534 = vmatprep.subr.mxu0 0.0
  %535 = vmatpush2.xpose.msra.mxu0 0.0
  %536 = vmatprep.subr.mxu0 0.0
  %537 = vmatpush2.xpose.msra.mxu0 0.0
  %538 = vmatprep.subr.mxu0 0.0
  %539 = vmatpush2.xpose.msra.mxu0 0.0
  %540 = vmatprep.subr.mxu0 0.0
  %541 = vmatpush2.xpose.msra.mxu0 0.0
  %542 = vmatprep.subr.mxu0 0.0
  %543 = vmatpush2.xpose.msra.mxu0 0.0
  %544 = vmatprep.subr.mxu0 0.0
  %545 = vmatpush2.xpose.msra.mxu0 0.0
  %546 = vmatprep.subr.mxu0 0.0
  %547 = vmatpush2.xpose.msra.mxu0 0.0
  %548 = vmatprep.subr.mxu0 0.0
  %549 = vmatpush2.xpose.msra.mxu0 0.0
  %550 = vmatprep.subr.mxu0 0.0
  %551 = vmatpush2.xpose.msra.mxu0 0.0
  %552 = vmatprep.subr.mxu0 0.0
  %553 = vmatpush2.xpose.msra.mxu0 0.0
  %554 = vmatprep.subr.mxu0 0.0
  %555 = vmatpush2.xpose.msra.mxu0 0.0
  %556 = vmatprep.subr.mxu0 0.0
  %557 = vmatpush2.xpose.msra.mxu0 0.0
  %558 = vmatprep.subr.mxu0 0.0
  %559 = vmatpush2.xpose.msra.mxu0 0.0
  %560 = vmatprep.mubr.f32.mxu0 0.0
  %561 = vmatmul.mubr.f32.gmra.mxu0 %v491
  %v562 = vpop.f32.mrf.mxu0
  %v563 = vadd.f32 %v32, %v562
  %v564 = vpop.f32.mrf.mxu0
  %565 = vdwg.mxu0
  %v567 = vsel %vm33, %v30, 0
  %v570 = vsel %vm33, %v22, 0
  %572 = vmatprep.subr.mxu0 0.0
  %573 = vmatpush1.xpose.msra.mxu0 0.0
  %574 = vmatprep.subr.mxu0 0.0
  %575 = vmatpush1.xpose.msra.mxu0 0.0
  %576 = vmatprep.subr.mxu0 0.0
  %577 = vmatpush1.xpose.msra.mxu0 0.0
  %578 = vmatprep.subr.mxu0 0.0
  %579 = vmatpush1.xpose.msra.mxu0 0.0
  %580 = vmatprep.subr.mxu0 0.0
  %581 = vmatpush1.xpose.msra.mxu0 0.0
  %582 = vmatprep.subr.mxu0 0.0
  %583 = vmatpush1.xpose.msra.mxu0 0.0
  %584 = vmatprep.subr.mxu0 0.0
  %585 = vmatpush1.xpose.msra.mxu0 0.0
  %586 = vmatprep.subr.mxu0 0.0
  %587 = vmatpush1.xpose.msra.mxu0 0.0
  %588 = vmatprep.subr.mxu0 0.0
  %589 = vmatpush1.xpose.msra.mxu0 0.0
  %590 = vmatprep.subr.mxu0 0.0
  %591 = vmatpush1.xpose.msra.mxu0 0.0
  %592 = vmatprep.subr.mxu0 0.0
  %593 = vmatpush1.xpose.msra.mxu0 0.0
  %594 = vmatprep.subr.mxu0 0.0
  %595 = vmatpush1.xpose.msra.mxu0 0.0
  %596 = vmatprep.subr.mxu0 0.0
  %597 = vmatpush1.xpose.msra.mxu0 0.0
  %598 = vmatprep.subr.mxu0 0.0
  %599 = vmatpush1.xpose.msra.mxu0 0.0
  %600 = vmatprep.subr.mxu0 0.0
  %601 = vmatpush1.xpose.msra.mxu0 0.0
  %602 = vmatprep.subr.mxu0 0.0
  %603 = vmatpush1.xpose.msra.mxu0 %v570
  %604 = vmatprep.subr.mxu0 0.0
  %605 = vmatpush2.xpose.msra.mxu0 0.0
  %606 = vmatprep.subr.mxu0 0.0
  %607 = vmatpush2.xpose.msra.mxu0 0.0
  %608 = vmatprep.subr.mxu0 0.0
  %609 = vmatpush2.xpose.msra.mxu0 0.0
  %610 = vmatprep.subr.mxu0 0.0
  %611 = vmatpush2.xpose.msra.mxu0 0.0
  %612 = vmatprep.subr.mxu0 0.0
  %613 = vmatpush2.xpose.msra.mxu0 0.0
  %614 = vmatprep.subr.mxu0 0.0
  %615 = vmatpush2.xpose.msra.mxu0 0.0
  %616 = vmatprep.subr.mxu0 0.0
  %617 = vmatpush2.xpose.msra.mxu0 0.0
  %618 = vmatprep.subr.mxu0 0.0
  %619 = vmatpush2.xpose.msra.mxu0 0.0
  %620 = vmatprep.subr.mxu0 0.0
  %621 = vmatpush2.xpose.msra.mxu0 0.0
  %622 = vmatprep.subr.mxu0 0.0
  %623 = vmatpush2.xpose.msra.mxu0 0.0
  %624 = vmatprep.subr.mxu0 0.0
  %625 = vmatpush2.xpose.msra.mxu0 0.0
  %626 = vmatprep.subr.mxu0 0.0
  %627 = vmatpush2.xpose.msra.mxu0 0.0
  %628 = vmatprep.subr.mxu0 0.0
  %629 = vmatpush2.xpose.msra.mxu0 0.0
  %630 = vmatprep.subr.mxu0 0.0
  %631 = vmatpush2.xpose.msra.mxu0 0.0
  %632 = vmatprep.subr.mxu0 0.0
  %633 = vmatpush2.xpose.msra.mxu0 0.0
  %634 = vmatprep.subr.mxu0 0.0
  %635 = vmatpush2.xpose.msra.mxu0 0.0
  %636 = vmatprep.mubr.f32.mxu0 0.0
  %637 = vmatmul.mubr.f32.gmra.mxu0 %v567
  %v638 = vpop.f32.mrf.mxu0
  %v639 = vadd.f32 %v32, %v638
  %v640 = vpop.f32.mrf.mxu0
  %641 = vdwg.mxu0
  %vm642 = vcmask 57344
  %v643 = vsel %vm642, %v107, -inf
  %644 = vmax.xlane.f32.xlu0 %v643
  %v645 = vpop.xlane.xlu0 %644
  %v646 = vsel %vm642, %v183, -inf
  %647 = vmax.xlane.f32.xlu0 %v646
  %v648 = vpop.xlane.xlu0 %647
  %v649 = vsel %vm642, %v259, -inf
  %650 = vmax.xlane.f32.xlu0 %v649
  %v651 = vpop.xlane.xlu0 %650
  %v652 = vsel %vm642, %v335, -inf
  %653 = vmax.xlane.f32.xlu0 %v652
  %v654 = vpop.xlane.xlu0 %653
  %v655 = vsel %vm642, %v411, -inf
  %656 = vmax.xlane.f32.xlu0 %v655
  %v657 = vpop.xlane.xlu0 %656
  %v658 = vsel %vm642, %v487, -inf
  %659 = vmax.xlane.f32.xlu0 %v658
  %v660 = vpop.xlane.xlu0 %659
  %v661 = vsel %vm642, %v563, -inf
  %662 = vmax.xlane.f32.xlu0 %v661
  %v663 = vpop.xlane.xlu0 %662
  %v664 = vsel %vm642, %v639, -inf
  %665 = vmax.xlane.f32.xlu0 %v664
  %v666 = vpop.xlane.xlu0 %665
  %v667 = vsub.f32 %v107, %v645
  %v668 = vsub.f32 %v183, %v648
  %v669 = vsub.f32 %v259, %v651
  %v670 = vsub.f32 %v335, %v654
  %v671 = vsub.f32 %v411, %v657
  %v672 = vsub.f32 %v487, %v660
  %v673 = vsub.f32 %v563, %v663
  %v674 = vsub.f32 %v639, %v666
  %v675 = vmul.f32 %v667, 1.442695
  %v676 = vpow.pop %v675
  %v677 = vmul.f32 %v668, 1.442695
  %v678 = vpow.pop %v677
  %v679 = vmul.f32 %v669, 1.442695
  %v680 = vpow.pop %v679
  %v681 = vmul.f32 %v670, 1.442695
  %v682 = vpow.pop %v681
  %v683 = vmul.f32 %v671, 1.442695
  %v684 = vpow.pop %v683
  %v685 = vmul.f32 %v672, 1.442695
  %v686 = vpow.pop %v685
  %v687 = vmul.f32 %v673, 1.442695
  %v688 = vpow.pop %v687
  %v689 = vmul.f32 %v674, 1.442695
  %v690 = vpow.pop %v689
  %v691 = vsel %vm642, %v676, 0.0
  %692 = vadd.xlane.f32.xlu0 %v691
  %v693 = vpop.xlane.xlu0 %692
  %v694 = vsel %vm642, %v678, 0.0
  %695 = vadd.xlane.f32.xlu0 %v694
  %v696 = vpop.xlane.xlu0 %695
  %v697 = vsel %vm642, %v680, 0.0
  %698 = vadd.xlane.f32.xlu0 %v697
  %v699 = vpop.xlane.xlu0 %698
  %v700 = vsel %vm642, %v682, 0.0
  %701 = vadd.xlane.f32.xlu0 %v700
  %v702 = vpop.xlane.xlu0 %701
  %v703 = vsel %vm642, %v684, 0.0
  %704 = vadd.xlane.f32.xlu0 %v703
  %v705 = vpop.xlane.xlu0 %704
  %v706 = vsel %vm642, %v686, 0.0
  %707 = vadd.xlane.f32.xlu0 %v706
  %v708 = vpop.xlane.xlu0 %707
  %v709 = vsel %vm642, %v688, 0.0
  %710 = vadd.xlane.f32.xlu0 %v709
  %v711 = vpop.xlane.xlu0 %710
  %v712 = vsel %vm642, %v690, 0.0
  %713 = vadd.xlane.f32.xlu0 %v712
  %v714 = vpop.xlane.xlu0 %713
  %vm715 = vcmask 64512
  %v717 = vsel %vm715, %v676, 0
  %719 = vmatprep.subr.mxu0 0.0
  %720 = vmatpush1.msra.mxu0 0.0
  %721 = vmatprep.subr.mxu0 0.0
  %722 = vmatpush1.msra.mxu0 0.0
  %723 = vmatprep.subr.mxu0 0.0
  %724 = vmatpush1.msra.mxu0 0.0
  %725 = vmatprep.subr.mxu0 0.0
  %726 = vmatpush1.msra.mxu0 0.0
  %727 = vmatprep.subr.mxu0 0.0
  %728 = vmatpush1.msra.mxu0 0.0
  %729 = vmatprep.subr.mxu0 0.0
  %730 = vmatpush1.msra.mxu0 0.0
  %731 = vmatprep.subr.mxu0 0.0
  %732 = vmatpush1.msra.mxu0 0.0
  %733 = vmatprep.subr.mxu0 0.0
  %734 = vmatpush1.msra.mxu0 0.0
  %735 = vmatprep.subr.mxu0 0.0
  %736 = vmatpush1.msra.mxu0 0.0
  %737 = vmatprep.subr.mxu0 0.0
  %738 = vmatpush1.msra.mxu0 0.0
  %739 = vmatprep.subr.mxu0 0.0
  %740 = vmatpush1.msra.mxu0 0.0
  %741 = vmatprep.subr.mxu0 0.0
  %742 = vmatpush1.msra.mxu0 0.0
  %743 = vmatprep.subr.mxu0 0.0
  %744 = vmatpush1.msra.mxu0 0.0
  %745 = vmatprep.subr.mxu0 0.0
  %746 = vmatpush1.msra.mxu0 0.0
  %747 = vmatprep.subr.mxu0 0.0
  %748 = vmatpush1.msra.mxu0 0.0
  %749 = vmatprep.subr.mxu0 0.0
  %750 = vmatpush1.msra.mxu0 %v15
  %751 = vmatprep.subr.mxu0 0.0
  %752 = vmatpush2.msra.mxu0 0.0
  %753 = vmatprep.subr.mxu0 0.0
  %754 = vmatpush2.msra.mxu0 0.0
  %755 = vmatprep.subr.mxu0 0.0
  %756 = vmatpush2.msra.mxu0 0.0
  %757 = vmatprep.subr.mxu0 0.0
  %758 = vmatpush2.msra.mxu0 0.0
  %759 = vmatprep.subr.mxu0 0.0
  %760 = vmatpush2.msra.mxu0 0.0
  %761 = vmatprep.subr.mxu0 0.0
  %762 = vmatpush2.msra.mxu0 0.0
  %763 = vmatprep.subr.mxu0 0.0
  %764 = vmatpush2.msra.mxu0 0.0
  %765 = vmatprep.subr.mxu0 0.0
  %766 = vmatpush2.msra.mxu0 0.0
  %767 = vmatprep.subr.mxu0 0.0
  %768 = vmatpush2.msra.mxu0 0.0
  %769 = vmatprep.subr.mxu0 0.0
  %770 = vmatpush2.msra.mxu0 0.0
  %771 = vmatprep.subr.mxu0 0.0
  %772 = vmatpush2.msra.mxu0 0.0
  %773 = vmatprep.subr.mxu0 0.0
  %774 = vmatpush2.msra.mxu0 0.0
  %775 = vmatprep.subr.mxu0 0.0
  %776 = vmatpush2.msra.mxu0 0.0
  %777 = vmatprep.subr.mxu0 0.0
  %778 = vmatpush2.msra.mxu0 0.0
  %779 = vmatprep.subr.mxu0 0.0
  %780 = vmatpush2.msra.mxu0 0.0
  %781 = vmatprep.subr.mxu0 0.0
  %782 = vmatpush2.msra.mxu0 0.0
  %783 = vmatprep.mubr.f32.mxu0 0.0
  %784 = vmatmul.mubr.f32.gmra.mxu0 %v717
  %v785 = vpop.f32.mrf.mxu0
  %v786 = vadd.f32 0.0, %v785
  %v787 = vpop.f32.mrf.mxu0
  %788 = vdwg.mxu0
  %v790 = vsel %vm715, %v678, 0
  %792 = vmatprep.subr.mxu0 0.0
  %793 = vmatpush1.msra.mxu0 0.0
  %794 = vmatprep.subr.mxu0 0.0
  %795 = vmatpush1.msra.mxu0 0.0
  %796 = vmatprep.subr.mxu0 0.0
  %797 = vmatpush1.msra.mxu0 0.0
  %798 = vmatprep.subr.mxu0 0.0
  %799 = vmatpush1.msra.mxu0 0.0
  %800 = vmatprep.subr.mxu0 0.0
  %801 = vmatpush1.msra.mxu0 0.0
  %802 = vmatprep.subr.mxu0 0.0
  %803 = vmatpush1.msra.mxu0 0.0
  %804 = vmatprep.subr.mxu0 0.0
  %805 = vmatpush1.msra.mxu0 0.0
  %806 = vmatprep.subr.mxu0 0.0
  %807 = vmatpush1.msra.mxu0 0.0
  %808 = vmatprep.subr.mxu0 0.0
  %809 = vmatpush1.msra.mxu0 0.0
  %810 = vmatprep.subr.mxu0 0.0
  %811 = vmatpush1.msra.mxu0 0.0
  %812 = vmatprep.subr.mxu0 0.0
  %813 = vmatpush1.msra.mxu0 0.0
  %814 = vmatprep.subr.mxu0 0.0
  %815 = vmatpush1.msra.mxu0 0.0
  %816 = vmatprep.subr.mxu0 0.0
  %817 = vmatpush1.msra.mxu0 0.0
  %818 = vmatprep.subr.mxu0 0.0
  %819 = vmatpush1.msra.mxu0 0.0
  %820 = vmatprep.subr.mxu0 0.0
  %821 = vmatpush1.msra.mxu0 0.0
  %822 = vmatprep.subr.mxu0 0.0
  %823 = vmatpush1.msra.mxu0 %v16
  %824 = vmatprep.subr.mxu0 0.0
  %825 = vmatpush2.msra.mxu0 0.0
  %826 = vmatprep.subr.mxu0 0.0
  %827 = vmatpush2.msra.mxu0 0.0
  %828 = vmatprep.subr.mxu0 0.0
  %829 = vmatpush2.msra.mxu0 0.0
  %830 = vmatprep.subr.mxu0 0.0
  %831 = vmatpush2.msra.mxu0 0.0
  %832 = vmatprep.subr.mxu0 0.0
  %833 = vmatpush2.msra.mxu0 0.0
  %834 = vmatprep.subr.mxu0 0.0
  %835 = vmatpush2.msra.mxu0 0.0
  %836 = vmatprep.subr.mxu0 0.0
  %837 = vmatpush2.msra.mxu0 0.0
  %838 = vmatprep.subr.mxu0 0.0
  %839 = vmatpush2.msra.mxu0 0.0
  %840 = vmatprep.subr.mxu0 0.0
  %841 = vmatpush2.msra.mxu0 0.0
  %842 = vmatprep.subr.mxu0 0.0
  %843 = vmatpush2.msra.mxu0 0.0
  %844 = vmatprep.subr.mxu0 0.0
  %845 = vmatpush2.msra.mxu0 0.0
  %846 = vmatprep.subr.mxu0 0.0
  %847 = vmatpush2.msra.mxu0 0.0
  %848 = vmatprep.subr.mxu0 0.0
  %849 = vmatpush2.msra.mxu0 0.0
  %850 = vmatprep.subr.mxu0 0.0
  %851 = vmatpush2.msra.mxu0 0.0
  %852 = vmatprep.subr.mxu0 0.0
  %853 = vmatpush2.msra.mxu0 0.0
  %854 = vmatprep.subr.mxu0 0.0
  %855 = vmatpush2.msra.mxu0 0.0
  %856 = vmatprep.mubr.f32.mxu0 0.0
  %857 = vmatmul.mubr.f32.gmra.mxu0 %v790
  %v858 = vpop.f32.mrf.mxu0
  %v859 = vadd.f32 0.0, %v858
  %v860 = vpop.f32.mrf.mxu0
  %861 = vdwg.mxu0
  %v863 = vsel %vm715, %v680, 0
  %865 = vmatprep.subr.mxu0 0.0
  %866 = vmatpush1.msra.mxu0 0.0
  %867 = vmatprep.subr.mxu0 0.0
  %868 = vmatpush1.msra.mxu0 0.0
  %869 = vmatprep.subr.mxu0 0.0
  %870 = vmatpush1.msra.mxu0 0.0
  %871 = vmatprep.subr.mxu0 0.0
  %872 = vmatpush1.msra.mxu0 0.0
  %873 = vmatprep.subr.mxu0 0.0
  %874 = vmatpush1.msra.mxu0 0.0
  %875 = vmatprep.subr.mxu0 0.0
  %876 = vmatpush1.msra.mxu0 0.0
  %877 = vmatprep.subr.mxu0 0.0
  %878 = vmatpush1.msra.mxu0 0.0
  %879 = vmatprep.subr.mxu0 0.0
  %880 = vmatpush1.msra.mxu0 0.0
  %881 = vmatprep.subr.mxu0 0.0
  %882 = vmatpush1.msra.mxu0 0.0
  %883 = vmatprep.subr.mxu0 0.0
  %884 = vmatpush1.msra.mxu0 0.0
  %885 = vmatprep.subr.mxu0 0.0
  %886 = vmatpush1.msra.mxu0 0.0
  %887 = vmatprep.subr.mxu0 0.0
  %888 = vmatpush1.msra.mxu0 0.0
  %889 = vmatprep.subr.mxu0 0.0
  %890 = vmatpush1.msra.mxu0 0.0
  %891 = vmatprep.subr.mxu0 0.0
  %892 = vmatpush1.msra.mxu0 0.0
  %893 = vmatprep.subr.mxu0 0.0
  %894 = vmatpush1.msra.mxu0 0.0
  %895 = vmatprep.subr.mxu0 0.0
  %896 = vmatpush1.msra.mxu0 %v17
  %897 = vmatprep.subr.mxu0 0.0
  %898 = vmatpush2.msra.mxu0 0.0
  %899 = vmatprep.subr.mxu0 0.0
  %900 = vmatpush2.msra.mxu0 0.0
  %901 = vmatprep.subr.mxu0 0.0
  %902 = vmatpush2.msra.mxu0 0.0
  %903 = vmatprep.subr.mxu0 0.0
  %904 = vmatpush2.msra.mxu0 0.0
  %905 = vmatprep.subr.mxu0 0.0
  %906 = vmatpush2.msra.mxu0 0.0
  %907 = vmatprep.subr.mxu0 0.0
  %908 = vmatpush2.msra.mxu0 0.0
  %909 = vmatprep.subr.mxu0 0.0
  %910 = vmatpush2.msra.mxu0 0.0
  %911 = vmatprep.subr.mxu0 0.0
  %912 = vmatpush2.msra.mxu0 0.0
  %913 = vmatprep.subr.mxu0 0.0
  %914 = vmatpush2.msra.mxu0 0.0
  %915 = vmatprep.subr.mxu0 0.0
  %916 = vmatpush2.msra.mxu0 0.0
  %917 = vmatprep.subr.mxu0 0.0
  %918 = vmatpush2.msra.mxu0 0.0
  %919 = vmatprep.subr.mxu0 0.0
  %920 = vmatpush2.msra.mxu0 0.0
  %921 = vmatprep.subr.mxu0 0.0
  %922 = vmatpush2.msra.mxu0 0.0
  %923 = vmatprep.subr.mxu0 0.0
  %924 = vmatpush2.msra.mxu0 0.0
  %925 = vmatprep.subr.mxu0 0.0
  %926 = vmatpush2.msra.mxu0 0.0
  %927 = vmatprep.subr.mxu0 0.0
  %928 = vmatpush2.msra.mxu0 0.0
  %929 = vmatprep.mubr.f32.mxu0 0.0
  %930 = vmatmul.mubr.f32.gmra.mxu0 %v863
  %v931 = vpop.f32.mrf.mxu0
  %v932 = vadd.f32 0.0, %v931
  %v933 = vpop.f32.mrf.mxu0
  %934 = vdwg.mxu0
  %v936 = vsel %vm715, %v682, 0
  %938 = vmatprep.subr.mxu0 0.0
  %939 = vmatpush1.msra.mxu0 0.0
  %940 = vmatprep.subr.mxu0 0.0
  %941 = vmatpush1.msra.mxu0 0.0
  %942 = vmatprep.subr.mxu0 0.0
  %943 = vmatpush1.msra.mxu0 0.0
  %944 = vmatprep.subr.mxu0 0.0
  %945 = vmatpush1.msra.mxu0 0.0
  %946 = vmatprep.subr.mxu0 0.0
  %947 = vmatpush1.msra.mxu0 0.0
  %948 = vmatprep.subr.mxu0 0.0
  %949 = vmatpush1.msra.mxu0 0.0
  %950 = vmatprep.subr.mxu0 0.0
  %951 = vmatpush1.msra.mxu0 0.0
  %952 = vmatprep.subr.mxu0 0.0
  %953 = vmatpush1.msra.mxu0 0.0
  %954 = vmatprep.subr.mxu0 0.0
  %955 = vmatpush1.msra.mxu0 0.0
  %956 = vmatprep.subr.mxu0 0.0
  %957 = vmatpush1.msra.mxu0 0.0
  %958 = vmatprep.subr.mxu0 0.0
  %959 = vmatpush1.msra.mxu0 0.0
  %960 = vmatprep.subr.mxu0 0.0
  %961 = vmatpush1.msra.mxu0 0.0
  %962 = vmatprep.subr.mxu0 0.0
  %963 = vmatpush1.msra.mxu0 0.0
  %964 = vmatprep.subr.mxu0 0.0
  %965 = vmatpush1.msra.mxu0 0.0
  %966 = vmatprep.subr.mxu0 0.0
  %967 = vmatpush1.msra.mxu0 0.0
  %968 = vmatprep.subr.mxu0 0.0
  %969 = vmatpush1.msra.mxu0 %v18
  %970 = vmatprep.subr.mxu0 0.0
  %971 = vmatpush2.msra.mxu0 0.0
  %972 = vmatprep.subr.mxu0 0.0
  %973 = vmatpush2.msra.mxu0 0.0
  %974 = vmatprep.subr.mxu0 0.0
  %975 = vmatpush2.msra.mxu0 0.0
  %976 = vmatprep.subr.mxu0 0.0
  %977 = vmatpush2.msra.mxu0 0.0
  %978 = vmatprep.subr.mxu0 0.0
  %979 = vmatpush2.msra.mxu0 0.0
  %980 = vmatprep.subr.mxu0 0.0
  %981 = vmatpush2.msra.mxu0 0.0
  %982 = vmatprep.subr.mxu0 0.0
  %983 = vmatpush2.msra.mxu0 0.0
  %984 = vmatprep.subr.mxu0 0.0
  %985 = vmatpush2.msra.mxu0 0.0
  %986 = vmatprep.subr.mxu0 0.0
  %987 = vmatpush2.msra.mxu0 0.0
  %988 = vmatprep.subr.mxu0 0.0
  %989 = vmatpush2.msra.mxu0 0.0
  %990 = vmatprep.subr.mxu0 0.0
  %991 = vmatpush2.msra.mxu0 0.0
  %992 = vmatprep.subr.mxu0 0.0
  %993 = vmatpush2.msra.mxu0 0.0
  %994 = vmatprep.subr.mxu0 0.0
  %995 = vmatpush2.msra.mxu0 0.0
  %996 = vmatprep.subr.mxu0 0.0
  %997 = vmatpush2.msra.mxu0 0.0
  %998 = vmatprep.subr.mxu0 0.0
  %999 = vmatpush2.msra.mxu0 0.0
  %1000 = vmatprep.subr.mxu0 0.0
  %1001 = vmatpush2.msra.mxu0 0.0
  %1002 = vmatprep.mubr.f32.mxu0 0.0
  %1003 = vmatmul.mubr.f32.gmra.mxu0 %v936
  %v1004 = vpop.f32.mrf.mxu0
  %v1005 = vadd.f32 0.0, %v1004
  %v1006 = vpop.f32.mrf.mxu0
  %1007 = vdwg.mxu0
  %v1009 = vsel %vm715, %v684, 0
  %1011 = vmatprep.subr.mxu0 0.0
  %1012 = vmatpush1.msra.mxu0 0.0
  %1013 = vmatprep.subr.mxu0 0.0
  %1014 = vmatpush1.msra.mxu0 0.0
  %1015 = vmatprep.subr.mxu0 0.0
  %1016 = vmatpush1.msra.mxu0 0.0
  %1017 = vmatprep.subr.mxu0 0.0
  %1018 = vmatpush1.msra.mxu0 0.0
  %1019 = vmatprep.subr.mxu0 0.0
  %1020 = vmatpush1.msra.mxu0 0.0
  %1021 = vmatprep.subr.mxu0 0.0
  %1022 = vmatpush1.msra.mxu0 0.0
  %1023 = vmatprep.subr.mxu0 0.0
  %1024 = vmatpush1.msra.mxu0 0.0
  %1025 = vmatprep.subr.mxu0 0.0
  %1026 = vmatpush1.msra.mxu0 0.0
  %1027 = vmatprep.subr.mxu0 0.0
  %1028 = vmatpush1.msra.mxu0 0.0
  %1029 = vmatprep.subr.mxu0 0.0
  %1030 = vmatpush1.msra.mxu0 0.0
  %1031 = vmatprep.subr.mxu0 0.0
  %1032 = vmatpush1.msra.mxu0 0.0
  %1033 = vmatprep.subr.mxu0 0.0
  %1034 = vmatpush1.msra.mxu0 0.0
  %1035 = vmatprep.subr.mxu0 0.0
  %1036 = vmatpush1.msra.mxu0 0.0
  %1037 = vmatprep.subr.mxu0 0.0
  %1038 = vmatpush1.msra.mxu0 0.0
  %1039 = vmatprep.subr.mxu0 0.0
  %1040 = vmatpush1.msra.mxu0 0.0
  %1041 = vmatprep.subr.mxu0 0.0
  %1042 = vmatpush1.msra.mxu0 %v19
  %1043 = vmatprep.subr.mxu0 0.0
  %1044 = vmatpush2.msra.mxu0 0.0
  %1045 = vmatprep.subr.mxu0 0.0
  %1046 = vmatpush2.msra.mxu0 0.0
  %1047 = vmatprep.subr.mxu0 0.0
  %1048 = vmatpush2.msra.mxu0 0.0
  %1049 = vmatprep.subr.mxu0 0.0
  %1050 = vmatpush2.msra.mxu0 0.0
  %1051 = vmatprep.subr.mxu0 0.0
  %1052 = vmatpush2.msra.mxu0 0.0
  %1053 = vmatprep.subr.mxu0 0.0
  %1054 = vmatpush2.msra.mxu0 0.0
  %1055 = vmatprep.subr.mxu0 0.0
  %1056 = vmatpush2.msra.mxu0 0.0
  %1057 = vmatprep.subr.mxu0 0.0
  %1058 = vmatpush2.msra.mxu0 0.0
  %1059 = vmatprep.subr.mxu0 0.0
  %1060 = vmatpush2.msra.mxu0 0.0
  %1061 = vmatprep.subr.mxu0 0.0
  %1062 = vmatpush2.msra.mxu0 0.0
  %1063 = vmatprep.subr.mxu0 0.0
  %1064 = vmatpush2.msra.mxu0 0.0
  %1065 = vmatprep.subr.mxu0 0.0
  %1066 = vmatpush2.msra.mxu0 0.0
  %1067 = vmatprep.subr.mxu0 0.0
  %1068 = vmatpush2.msra.mxu0 0.0
  %1069 = vmatprep.subr.mxu0 0.0
  %1070 = vmatpush2.msra.mxu0 0.0
  %1071 = vmatprep.subr.mxu0 0.0
  %1072 = vmatpush2.msra.mxu0 0.0
  %1073 = vmatprep.subr.mxu0 0.0
  %1074 = vmatpush2.msra.mxu0 0.0
  %1075 = vmatprep.mubr.f32.mxu0 0.0
  %1076 = vmatmul.mubr.f32.gmra.mxu0 %v1009
  %v1077 = vpop.f32.mrf.mxu0
  %v1078 = vadd.f32 0.0, %v1077
  %v1079 = vpop.f32.mrf.mxu0
  %1080 = vdwg.mxu0
  %v1082 = vsel %vm715, %v686, 0
  %1084 = vmatprep.subr.mxu0 0.0
  %1085 = vmatpush1.msra.mxu0 0.0
  %1086 = vmatprep.subr.mxu0 0.0
  %1087 = vmatpush1.msra.mxu0 0.0
  %1088 = vmatprep.subr.mxu0 0.0
  %1089 = vmatpush1.msra.mxu0 0.0
  %1090 = vmatprep.subr.mxu0 0.0
  %1091 = vmatpush1.msra.mxu0 0.0
  %1092 = vmatprep.subr.mxu0 0.0
  %1093 = vmatpush1.msra.mxu0 0.0
  %1094 = vmatprep.subr.mxu0 0.0
  %1095 = vmatpush1.msra.mxu0 0.0
  %1096 = vmatprep.subr.mxu0 0.0
  %1097 = vmatpush1.msra.mxu0 0.0
  %1098 = vmatprep.subr.mxu0 0.0
  %1099 = vmatpush1.msra.mxu0 0.0
  %1100 = vmatprep.subr.mxu0 0.0
  %1101 = vmatpush1.msra.mxu0 0.0
  %1102 = vmatprep.subr.mxu0 0.0
  %1103 = vmatpush1.msra.mxu0 0.0
  %1104 = vmatprep.subr.mxu0 0.0
  %1105 = vmatpush1.msra.mxu0 0.0
  %1106 = vmatprep.subr.mxu0 0.0
  %1107 = vmatpush1.msra.mxu0 0.0
  %1108 = vmatprep.subr.mxu0 0.0
  %1109 = vmatpush1.msra.mxu0 0.0
  %1110 = vmatprep.subr.mxu0 0.0
  %1111 = vmatpush1.msra.mxu0 0.0
  %1112 = vmatprep.subr.mxu0 0.0
  %1113 = vmatpush1.msra.mxu0 0.0
  %1114 = vmatprep.subr.mxu0 0.0
  %1115 = vmatpush1.msra.mxu0 %v20
  %1116 = vmatprep.subr.mxu0 0.0
  %1117 = vmatpush2.msra.mxu0 0.0
  %1118 = vmatprep.subr.mxu0 0.0
  %1119 = vmatpush2.msra.mxu0 0.0
  %1120 = vmatprep.subr.mxu0 0.0
  %1121 = vmatpush2.msra.mxu0 0.0
  %1122 = vmatprep.subr.mxu0 0.0
  %1123 = vmatpush2.msra.mxu0 0.0
  %1124 = vmatprep.subr.mxu0 0.0
  %1125 = vmatpush2.msra.mxu0 0.0
  %1126 = vmatprep.subr.mxu0 0.0
  %1127 = vmatpush2.msra.mxu0 0.0
  %1128 = vmatprep.subr.mxu0 0.0
  %1129 = vmatpush2.msra.mxu0 0.0
  %1130 = vmatprep.subr.mxu0 0.0
  %1131 = vmatpush2.msra.mxu0 0.0
  %1132 = vmatprep.subr.mxu0 0.0
  %1133 = vmatpush2.msra.mxu0 0.0
  %1134 = vmatprep.subr.mxu0 0.0
  %1135 = vmatpush2.msra.mxu0 0.0
  %1136 = vmatprep.subr.mxu0 0.0
  %1137 = vmatpush2.msra.mxu0 0.0
  %1138 = vmatprep.subr.mxu0 0.0
  %1139 = vmatpush2.msra.mxu0 0.0
  %1140 = vmatprep.subr.mxu0 0.0
  %1141 = vmatpush2.msra.mxu0 0.0
  %1142 = vmatprep.subr.mxu0 0.0
  %1143 = vmatpush2.msra.mxu0 0.0
  %1144 = vmatprep.subr.mxu0 0.0
  %1145 = vmatpush2.msra.mxu0 0.0
  %1146 = vmatprep.subr.mxu0 0.0
  %1147 = vmatpush2.msra.mxu0 0.0
  %1148 = vmatprep.mubr.f32.mxu0 0.0
  %1149 = vmatmul.mubr.f32.gmra.mxu0 %v1082
  %v1150 = vpop.f32.mrf.mxu0
  %v1151 = vadd.f32 0.0, %v1150
  %v1152 = vpop.f32.mrf.mxu0
  %1153 = vdwg.mxu0
  %v1155 = vsel %vm715, %v688, 0
  %1157 = vmatprep.subr.mxu0 0.0
  %1158 = vmatpush1.msra.mxu0 0.0
  %1159 = vmatprep.subr.mxu0 0.0
  %1160 = vmatpush1.msra.mxu0 0.0
  %1161 = vmatprep.subr.mxu0 0.0
  %1162 = vmatpush1.msra.mxu0 0.0
  %1163 = vmatprep.subr.mxu0 0.0
  %1164 = vmatpush1.msra.mxu0 0.0
  %1165 = vmatprep.subr.mxu0 0.0
  %1166 = vmatpush1.msra.mxu0 0.0
  %1167 = vmatprep.subr.mxu0 0.0
  %1168 = vmatpush1.msra.mxu0 0.0
  %1169 = vmatprep.subr.mxu0 0.0
  %1170 = vmatpush1.msra.mxu0 0.0
  %1171 = vmatprep.subr.mxu0 0.0
  %1172 = vmatpush1.msra.mxu0 0.0
  %1173 = vmatprep.subr.mxu0 0.0
  %1174 = vmatpush1.msra.mxu0 0.0
  %1175 = vmatprep.subr.mxu0 0.0
  %1176 = vmatpush1.msra.mxu0 0.0
  %1177 = vmatprep.subr.mxu0 0.0
  %1178 = vmatpush1.msra.mxu0 0.0
  %1179 = vmatprep.subr.mxu0 0.0
  %1180 = vmatpush1.msra.mxu0 0.0
  %1181 = vmatprep.subr.mxu0 0.0
  %1182 = vmatpush1.msra.mxu0 0.0
  %1183 = vmatprep.subr.mxu0 0.0
  %1184 = vmatpush1.msra.mxu0 0.0
  %1185 = vmatprep.subr.mxu0 0.0
  %1186 = vmatpush1.msra.mxu0 0.0
  %1187 = vmatprep.subr.mxu0 0.0
  %1188 = vmatpush1.msra.mxu0 %v21
  %1189 = vmatprep.subr.mxu0 0.0
  %1190 = vmatpush2.msra.mxu0 0.0
  %1191 = vmatprep.subr.mxu0 0.0
  %1192 = vmatpush2.msra.mxu0 0.0
  %1193 = vmatprep.subr.mxu0 0.0
  %1194 = vmatpush2.msra.mxu0 0.0
  %1195 = vmatprep.subr.mxu0 0.0
  %1196 = vmatpush2.msra.mxu0 0.0
  %1197 = vmatprep.subr.mxu0 0.0
  %1198 = vmatpush2.msra.mxu0 0.0
  %1199 = vmatprep.subr.mxu0 0.0
  %1200 = vmatpush2.msra.mxu0 0.0
  %1201 = vmatprep.subr.mxu0 0.0
  %1202 = vmatpush2.msra.mxu0 0.0
  %1203 = vmatprep.subr.mxu0 0.0
  %1204 = vmatpush2.msra.mxu0 0.0
  %1205 = vmatprep.subr.mxu0 0.0
  %1206 = vmatpush2.msra.mxu0 0.0
  %1207 = vmatprep.subr.mxu0 0.0
  %1208 = vmatpush2.msra.mxu0 0.0
  %1209 = vmatprep.subr.mxu0 0.0
  %1210 = vmatpush2.msra.mxu0 0.0
  %1211 = vmatprep.subr.mxu0 0.0
  %1212 = vmatpush2.msra.mxu0 0.0
  %1213 = vmatprep.subr.mxu0 0.0
  %1214 = vmatpush2.msra.mxu0 0.0
  %1215 = vmatprep.subr.mxu0 0.0
  %1216 = vmatpush2.msra.mxu0 0.0
  %1217 = vmatprep.subr.mxu0 0.0
  %1218 = vmatpush2.msra.mxu0 0.0
  %1219 = vmatprep.subr.mxu0 0.0
  %1220 = vmatpush2.msra.mxu0 0.0
  %1221 = vmatprep.mubr.f32.mxu0 0.0
  %1222 = vmatmul.mubr.f32.gmra.mxu0 %v1155
  %v1223 = vpop.f32.mrf.mxu0
  %v1224 = vadd.f32 0.0, %v1223
  %v1225 = vpop.f32.mrf.mxu0
  %1226 = vdwg.mxu0
  %v1228 = vsel %vm715, %v690, 0
  %1230 = vmatprep.subr.mxu0 0.0
  %1231 = vmatpush1.msra.mxu0 0.0
  %1232 = vmatprep.subr.mxu0 0.0
  %1233 = vmatpush1.msra.mxu0 0.0
  %1234 = vmatprep.subr.mxu0 0.0
  %1235 = vmatpush1.msra.mxu0 0.0
  %1236 = vmatprep.subr.mxu0 0.0
  %1237 = vmatpush1.msra.mxu0 0.0
  %1238 = vmatprep.subr.mxu0 0.0
  %1239 = vmatpush1.msra.mxu0 0.0
  %1240 = vmatprep.subr.mxu0 0.0
  %1241 = vmatpush1.msra.mxu0 0.0
  %1242 = vmatprep.subr.mxu0 0.0
  %1243 = vmatpush1.msra.mxu0 0.0
  %1244 = vmatprep.subr.mxu0 0.0
  %1245 = vmatpush1.msra.mxu0 0.0
  %1246 = vmatprep.subr.mxu0 0.0
  %1247 = vmatpush1.msra.mxu0 0.0
  %1248 = vmatprep.subr.mxu0 0.0
  %1249 = vmatpush1.msra.mxu0 0.0
  %1250 = vmatprep.subr.mxu0 0.0
  %1251 = vmatpush1.msra.mxu0 0.0
  %1252 = vmatprep.subr.mxu0 0.0
  %1253 = vmatpush1.msra.mxu0 0.0
  %1254 = vmatprep.subr.mxu0 0.0
  %1255 = vmatpush1.msra.mxu0 0.0
  %1256 = vmatprep.subr.mxu0 0.0
  %1257 = vmatpush1.msra.mxu0 0.0
  %1258 = vmatprep.subr.mxu0 0.0
  %1259 = vmatpush1.msra.mxu0 0.0
  %1260 = vmatprep.subr.mxu0 0.0
  %1261 = vmatpush1.msra.mxu0 %v22
  %1262 = vmatprep.subr.mxu0 0.0
  %1263 = vmatpush2.msra.mxu0 0.0
  %1264 = vmatprep.subr.mxu0 0.0
  %1265 = vmatpush2.msra.mxu0 0.0
  %1266 = vmatprep.subr.mxu0 0.0
  %1267 = vmatpush2.msra.mxu0 0.0
  %1268 = vmatprep.subr.mxu0 0.0
  %1269 = vmatpush2.msra.mxu0 0.0
  %1270 = vmatprep.subr.mxu0 0.0
  %1271 = vmatpush2.msra.mxu0 0.0
  %1272 = vmatprep.subr.mxu0 0.0
  %1273 = vmatpush2.msra.mxu0 0.0
  %1274 = vmatprep.subr.mxu0 0.0
  %1275 = vmatpush2.msra.mxu0 0.0
  %1276 = vmatprep.subr.mxu0 0.0
  %1277 = vmatpush2.msra.mxu0 0.0
  %1278 = vmatprep.subr.mxu0 0.0
  %1279 = vmatpush2.msra.mxu0 0.0
  %1280 = vmatprep.subr.mxu0 0.0
  %1281 = vmatpush2.msra.mxu0 0.0
  %1282 = vmatprep.subr.mxu0 0.0
  %1283 = vmatpush2.msra.mxu0 0.0
  %1284 = vmatprep.subr.mxu0 0.0
  %1285 = vmatpush2.msra.mxu0 0.0
  %1286 = vmatprep.subr.mxu0 0.0
  %1287 = vmatpush2.msra.mxu0 0.0
  %1288 = vmatprep.subr.mxu0 0.0
  %1289 = vmatpush2.msra.mxu0 0.0
  %1290 = vmatprep.subr.mxu0 0.0
  %1291 = vmatpush2.msra.mxu0 0.0
  %1292 = vmatprep.subr.mxu0 0.0
  %1293 = vmatpush2.msra.mxu0 0.0
  %1294 = vmatprep.mubr.f32.mxu0 0.0
  %1295 = vmatmul.mubr.f32.gmra.mxu0 %v1228
  %v1296 = vpop.f32.mrf.mxu0
  %v1297 = vadd.f32 0.0, %v1296
  %v1298 = vpop.f32.mrf.mxu0
  %1299 = vdwg.mxu0
  %v1300 = vrcp.pop %v693
  %v1301 = vrcp.pop %v696
  %v1302 = vrcp.pop %v699
  %v1303 = vrcp.pop %v702
  %v1304 = vrcp.pop %v705
  %v1305 = vrcp.pop %v708
  %v1306 = vrcp.pop %v711
  %v1307 = vrcp.pop %v714
  %v1308 = vmul.f32 %v786, %v1300
  %v1309 = vmul.f32 %v859, %v1301
  %v1310 = vmul.f32 %v932, %v1302
  %v1311 = vmul.f32 %v1005, %v1303
  %v1312 = vmul.f32 %v1078, %v1304
  %v1313 = vmul.f32 %v1151, %v1305
  %v1314 = vmul.f32 %v1224, %v1306
  %v1315 = vmul.f32 %v1297, %v1307
  %vm1316 = vcmask 253952
  %1317 = vst.msk [vmem:[%s3] sm:$0x1] %vm1316, %v1308
  %1318 = vst.msk [vmem:[%s3 + $0x1] sm:$0x1] %vm1316, %v1309
  %1319 = vst.msk [vmem:[%s3 + $0x2] sm:$0x1] %vm1316, %v1310
  %1320 = vst.msk [vmem:[%s3 + $0x3] sm:$0x1] %vm1316, %v1311
  %1321 = vst.msk [vmem:[%s3 + $0x4] sm:$0x1] %vm1316, %v1312
  %1322 = vst.msk [vmem:[%s3 + $0x5] sm:$0x1] %vm1316, %v1313
  %1323 = vst.msk [vmem:[%s3 + $0x6] sm:$0x1] %vm1316, %v1314
  %1324 = vst.msk [vmem:[%s3 + $0x7] sm:$0x1] %vm1316, %v1315
  // Predicated region
  $region14: #{attention_pooling.1} parent=0 // pred_check
    _
  $region15: #{attention_pooling.1} parent=0 // pred_check_branch
    %1326 = sbr.rel (0) target = $region17
  $region16: #{attention_pooling.1} parent=0 // pred_region
    _
  $region17: #{attention_pooling.1} parent=0 // pred_fallthru
    _
  // Predicated region
  $region18: #{attention_pooling.1} parent=0 // pred_check
    _
  $region19: #{attention_pooling.1} parent=0 // pred_check_branch
    %1328 = sbr.rel (0) target = $region21
  $region20: #{attention_pooling.1} parent=0 // pred_region
    _
  $region21: #{attention_pooling.1} parent=0 // pred_fallthru
    _

</llo_original>
